<compile_context>
chip_gen: v7x
topology: tpu7x:2x2x1
jax: 0.10.0
libtpu: 0.0.40
codegen_flags: <defaults>
</compile_context>

<pallas_src>
import math

import jax
import jax.numpy as jnp
from jax import lax
from jax.experimental import pallas as pl
from jax.experimental.pallas import tpu as pltpu


def _vmem_limit():
    """Generation-aware scoped-VMEM limit (v5e/v6e -> 96 MiB, v7x -> 48 MiB)."""
    try:
        cap = getattr(pltpu.get_tpu_info(), "vmem_capacity_bytes", None)
        if cap:
            return int(min(cap * 3 // 4, 96 * 1024 * 1024))
    except Exception:
        pass
    return 48 * 1024 * 1024


def _row_tile(m, max_tile=1024):
    """Row tile for the (M, C) passes: multiple of 8 sublanes, big, and
    preferably an exact divisor of M so no padding copy of x is needed."""
    m8 = -(-m // 8) * 8
    if m8 <= max_tile:
        return m8
    if m % 8 == 0:
        for t in range(max_tile, 255, -8):   # prefer a divisor >= 256
            if m % t == 0:
                return t
    return max_tile                           # fall back to row padding


# ----------------------------------------------------------------------------
# K1: per-channel sum / sum-of-squares (BN1 batch statistics), row-tiled.
#     Per-block partial sums -> grid axis is fully parallel (megacore on v7x).
# ----------------------------------------------------------------------------
def _channel_stats_kernel(x_ref, sum_ref, sq_ref):
    x = x_ref[...].astype(jnp.float32)
    sum_ref[0] = jnp.sum(x, axis=0, keepdims=True)
    sq_ref[0] = jnp.sum(x * x, axis=0, keepdims=True)


def _channel_stats(x2d, tm):
    mp, c = x2d.shape
    nb = mp // tm
    s, ss = pl.pallas_call(
        _channel_stats_kernel,
        grid=(nb,),
        in_specs=[pl.BlockSpec((tm, c), lambda i: (i, 0))],
        out_specs=[pl.BlockSpec((1, 1, c), lambda i: (i, 0, 0)),
                   pl.BlockSpec((1, 1, c), lambda i: (i, 0, 0))],
        out_shape=[jax.ShapeDtypeStruct((nb, 1, c), jnp.float32),
                   jax.ShapeDtypeStruct((nb, 1, c), jnp.float32)],
        compiler_params=pltpu.CompilerParams(
            dimension_semantics=("parallel",),
            vmem_limit_bytes=_vmem_limit()),
    )(x2d)
    return s.sum(axis=(0, 1)), ss.sum(axis=(0, 1))


# ----------------------------------------------------------------------------
# K2: fused BN1 + ReLU + 1x1 conv (channel matmul), row-tiled and pipelined,
#     with BN2 per-block partial sums emitted while y is still in VMEM.
#     Padded-row masking only on the last grid step.
# ----------------------------------------------------------------------------
def _make_conv1x1_kernel(tm, m_real, need_mask):
    def kernel(x_ref, scale_ref, bias_ref, w_ref, y_ref, sum_ref, sq_ref):
        a = jnp.maximum(x_ref[...] * scale_ref[...] + bias_ref[...], 0.0)
        y = jnp.dot(a, w_ref[...], preferred_element_type=jnp.float32)
        y_ref[...] = y.astype(y_ref.dtype)

        sum_ref[0] = jnp.sum(y, axis=0, keepdims=True)
        sq_ref[0] = jnp.sum(y * y, axis=0, keepdims=True)

        if need_mask:
            # Padded rows only exist in the last tile: mask their conv outputs
            # out of the BN2 sums there and nowhere else.
            @pl.when(pl.program_id(0) == pl.num_programs(0) - 1)
            def _mask():
                row = (pl.program_id(0) * tm
                       + lax.broadcasted_iota(jnp.int32, (tm, 1), 0))
                ym = jnp.where(row < m_real, y, 0.0)
                sum_ref[0] = jnp.sum(ym, axis=0, keepdims=True)
                sq_ref[0] = jnp.sum(ym * ym, axis=0, keepdims=True)

    return kernel


def _bn_relu_conv1x1_fused(x2d, scale, bias, w, m_real, tm):
    mp, cin = x2d.shape
    cout = w.shape[1]
    nb = mp // tm
    kernel = _make_conv1x1_kernel(tm, m_real, mp != m_real)
    y2d, s, ss = pl.pallas_call(
        kernel,
        grid=(nb,),
        in_specs=[pl.BlockSpec((tm, cin), lambda i: (i, 0)),
                  pl.BlockSpec((1, cin), lambda i: (0, 0)),
                  pl.BlockSpec((1, cin), lambda i: (0, 0)),
                  pl.BlockSpec((cin, cout), lambda i: (0, 0))],
        out_specs=[pl.BlockSpec((tm, cout), lambda i: (i, 0)),
                   pl.BlockSpec((1, 1, cout), lambda i: (i, 0, 0)),
                   pl.BlockSpec((1, 1, cout), lambda i: (i, 0, 0))],
        out_shape=[jax.ShapeDtypeStruct((mp, cout), jnp.float32),
                   jax.ShapeDtypeStruct((nb, 1, cout), jnp.float32),
                   jax.ShapeDtypeStruct((nb, 1, cout), jnp.float32)],
        compiler_params=pltpu.CompilerParams(
            dimension_semantics=("parallel",),
            vmem_limit_bytes=_vmem_limit()),
    )(x2d, scale.reshape(1, cin), bias.reshape(1, cin), w)
    return y2d, s.sum(axis=(0, 1)), ss.sum(axis=(0, 1))


# ----------------------------------------------------------------------------
# K3: fused BN2 + ReLU + 3x3 conv (padding=1).  Unpadded y in, halo built in a
#     small VMEM scratch, 9 accumulated K=Cin matmuls (no monolithic im2col),
#     lane-dense (Cout, H*W) output via an in-kernel transpose.
# ----------------------------------------------------------------------------
def _make_conv3x3_kernel(h, w, cin, cout, cout_p):
    def kernel(y_ref, scale_ref, bias_ref, w_ref, o_ref, pad_ref):
        # BN2 + ReLU on the unpadded tile.
        a = jnp.maximum(y_ref[0] * scale_ref[...] + bias_ref[...], 0.0)

        # Zero halo in VMEM == conv zero-padding of the *post-activation* map
        # (PyTorch).  No HBM pad pass over y is needed.
        pad_ref[...] = jnp.zeros_like(pad_ref)
        pad_ref[1:h + 1, 1:w + 1, :] = a
        ap = pad_ref[...]

        # 3x3 conv as 9 accumulated K=cin matmuls: bounded VMEM (v7x 64 MiB),
        # no lane-misaligned concatenation.
        acc = jnp.zeros((h * w, cout_p), jnp.float32)
        k = 0
        for dy in range(3):
            for dx in range(3):
                slab = ap[dy:dy + h, dx:dx + w, :].reshape(h * w, cin)
                acc = acc + jnp.dot(slab, w_ref[k * cin:(k + 1) * cin, :],
                                    preferred_element_type=jnp.float32)
                k += 1

        # Lane-dense store: (Cout, H*W) with H*W on the lane axis (unmasked
        # stores for H*W >= 128); also removes the wrapper transpose of z.
        acc_t = acc.T                      # (cout_p, h*w), cout_p = 128k
        o_ref[0] = acc_t[:cout, :].astype(o_ref.dtype)

    return kernel


def _bn_relu_conv3x3(y, scale, bias, w9p, h, w, cout):
    n = y.shape[0]
    cin = y.shape[-1]
    cout_p = w9p.shape[-1]
    # TODO(synk): for very large feature maps, tile H with a 1-row halo instead
    # of a whole image per grid step to keep the scratch/accumulator bounded.
    return pl.pallas_call(
        _make_conv3x3_kernel(h, w, cin, cout, cout_p),
        grid=(n,),
        in_specs=[pl.BlockSpec((1, h, w, cin), lambda i: (i, 0, 0, 0)),
                  pl.BlockSpec((1, 1, cin), lambda i: (0, 0, 0)),
                  pl.BlockSpec((1, 1, cin), lambda i: (0, 0, 0)),
                  pl.BlockSpec((9 * cin, cout_p), lambda i: (0, 0))],
        out_specs=pl.BlockSpec((1, cout, h * w), lambda i: (i, 0, 0)),
        out_shape=jax.ShapeDtypeStruct((n, cout, h * w), jnp.float32),
        scratch_shapes=[pltpu.VMEM((h + 2, w + 2, cin), jnp.float32)],
        compiler_params=pltpu.CompilerParams(
            dimension_semantics=("parallel",),  # batch images independent
            vmem_limit_bytes=_vmem_limit()),
    )(y, scale.reshape(1, 1, cin), bias.reshape(1, 1, cin), w9p)


# ----------------------------------------------------------------------------
# Full Bottleneck forward (wrapper).
# ----------------------------------------------------------------------------
def bottleneck_forward(x_nchw, params, row_tile=1024):
    eps = 1e-5
    g1, b1, w1 = params["gamma1"], params["beta1"], params["w1"]
    g2, b2, w2 = params["gamma2"], params["beta2"], params["w2"]

    x_nchw = x_nchw.astype(jnp.float32)
    # TODO(synk): fold this NCHW->NHWC transpose into K1/K2 (read (1,C,th,W)
    # blocks and transpose on the XLU) to save one full HBM pass over x.
    x = jnp.transpose(x_nchw, (0, 2, 3, 1))                    # NCHW -> NHWC
    n, h, w, c = x.shape
    inter_c = w1.shape[1]
    growth = w2.shape[-1]

    m = n * h * w
    tm = _row_tile(m, row_tile)
    mp = -(-m // tm) * tm
    x2d = x.reshape(m, c)
    if mp != m:
        # zero rows contribute nothing to the BN1 sums; their conv outputs are
        # masked out of the BN2 sums on the last K2 step and sliced off below.
        x2d = jnp.pad(x2d, ((0, mp - m), (0, 0)))

    # --- BN1 statistics ------------------------------------------------------
    s1, ss1 = _channel_stats(x2d, tm)
    mean1 = s1 / m
    var1 = jnp.maximum(ss1 / m - mean1 * mean1, 0.0)   # clamp cancellation
    scale1 = g1 / jnp.sqrt(var1 + eps)
    bias1 = b1 - mean1 * scale1

    # --- BN1 + ReLU + 1x1 conv, BN2 partial sums fused -----------------------
    y2d, s2, ss2 = _bn_relu_conv1x1_fused(x2d, scale1, bias1, w1, m, tm)
    mean2 = s2 / m
    var2 = jnp.maximum(ss2 / m - mean2 * mean2, 0.0)
    scale2 = g2 / jnp.sqrt(var2 + eps)
    bias2 = b2 - mean2 * scale2

    y = y2d[:m].reshape(n, h, w, inter_c)

    # --- BN2 + ReLU + 3x3 conv (pad=1), lane-dense (N, Cout, H*W) output -----
    cout_p = max(128, -(-growth // 128) * 128)                 # MXU/lane native
    w9 = w2.reshape(9 * inter_c, growth)                       # HWIO -> (9*Cin, Cout)
    w9p = jnp.pad(w9, ((0, 0), (0, cout_p - growth))) if cout_p != growth else w9
    z = _bn_relu_conv3x3(y, scale2, bias2, w9p, h, w, growth)  # (N, growth, H*W)
    z = z.reshape(n, growth, h, w)

    # Concatenate in NCHW so the original x is reused untouched.
    return jnp.concatenate([x_nchw, z], axis=1)


# ----------------------------------------------------------------------------
# Pure-JAX reference (for correctness check).
# ----------------------------------------------------------------------------
def reference_forward(x, params):
    eps = 1e-5
    g1, b1, w1 = params["gamma1"], params["beta1"], params["w1"]
    g2, b2, w2 = params["gamma2"], params["beta2"], params["w2"]

    m1 = x.mean(axis=(0, 2, 3), keepdims=True)
    v1 = x.var(axis=(0, 2, 3), keepdims=True)
    h = (x - m1) / jnp.sqrt(v1 + eps) * g1[None, :, None, None] + b1[None, :, None, None]
    h = jnp.maximum(h, 0.0)
    w1_oihw = jnp.transpose(w1, (1, 0))[:, :, None, None]
    y = lax.conv_general_dilated(h, w1_oihw, (1, 1), "VALID",
                                 dimension_numbers=("NCHW", "OIHW", "NCHW"))

    m2 = y.mean(axis=(0, 2, 3), keepdims=True)
    v2 = y.var(axis=(0, 2, 3), keepdims=True)
    h2 = (y - m2) / jnp.sqrt(v2 + eps) * g2[None, :, None, None] + b2[None, :, None, None]
    h2 = jnp.maximum(h2, 0.0)
    w2_oihw = jnp.transpose(w2, (3, 2, 0, 1))
    z = lax.conv_general_dilated(h2, w2_oihw, (1, 1), ((1, 1), (1, 1)),
                                 dimension_numbers=("NCHW", "OIHW", "NCHW"))
    return jnp.concatenate([x, z], axis=1)


if __name__ == "__main__":
    nChannels, growthRate = 4, 4
    interChannels = 4 * growthRate
    N, H, W = 2, 16, 16

    key = jax.random.PRNGKey(0)
    kx, kw1, kw2 = jax.random.split(key, 3)

    x = jax.random.normal(kx, (N, nChannels, H, W), jnp.float32)
    params = dict(
        gamma1=jnp.ones((nChannels,), jnp.float32),        # PyTorch BN default init
        beta1=jnp.zeros((nChannels,), jnp.float32),
        # conv1 weight: (Cin, Cout) == PyTorch (Cout, Cin, 1, 1) transposed
        w1=jax.random.normal(kw1, (nChannels, interChannels), jnp.float32)
        * (1.0 / math.sqrt(nChannels)),
        gamma2=jnp.ones((interChannels,), jnp.float32),
        beta2=jnp.zeros((interChannels,), jnp.float32),
        # conv2 weight: HWIO (3, 3, Cin, Cout) == PyTorch OIHW transposed
        w2=jax.random.normal(kw2, (3, 3, interChannels, growthRate), jnp.float32)
        * (1.0 / math.sqrt(9 * interChannels)),
    )

    out = jax.block_until_ready(bottleneck_forward(x, params))
    ref = jax.block_until_ready(reference_forward(x, params))

    assert out.shape == (N, nChannels + growthRate, H, W), out.shape
    max_err = float(jnp.max(jnp.abs(out - ref)))
    assert max_err < 2e-4, f"mismatch vs reference, max_err={max_err}"
    print("KERNEL_OK")
</pallas_src>

<mosaic_0001>
module attributes {stable_mosaic.version = 11 : i64} {
  func.func @_channel_stats_kernel(%arg0: i32, %arg1: memref<512x4xf32, #tpu.memory_space<vmem>>, %arg2: memref<1x1x4xf32, #tpu.memory_space<vmem>>, %arg3: memref<1x1x4xf32, #tpu.memory_space<vmem>>) attributes {dimension_semantics = [#tpu.dimension_semantics<parallel>], iteration_bounds = array<i64: 1>, scalar_prefetch = 0 : i64, scratch_operands = 0 : i64, tpu.core_type = #tpu.core_type<tc>, window_params = [{transform_indices = @transform_0, window_bounds = array<i64: 512, 4>}, {transform_indices = @transform_1, window_bounds = array<i64: 1, 1, 4>}, {transform_indices = @transform_2, window_bounds = array<i64: 1, 1, 4>}]} {
    %c0 = arith.constant 0 : index
    %c0_0 = arith.constant 0 : index
    %0 = vector.load %arg1[%c0, %c0_0] : memref<512x4xf32, #tpu.memory_space<vmem>>, vector<512x4xf32>
    %cst = arith.constant dense<0.000000e+00> : vector<4xf32>
    %1 = vector.multi_reduction <add>, %0, %cst [0] : vector<512x4xf32> to vector<4xf32>
    %2 = vector.shape_cast %1 : vector<4xf32> to vector<1x4xf32>
    %c0_1 = arith.constant 0 : index
    %c0_2 = arith.constant 0 : index
    %c0_3 = arith.constant 0 : index
    %3 = vector.load %arg2[%c0_1, %c0_2, %c0_3] : memref<1x1x4xf32, #tpu.memory_space<vmem>>, vector<1x1x4xf32>
    %4 = vector.shape_cast %3 : vector<1x1x4xf32> to vector<1x4xf32>
    %5 = vector.shape_cast %2 : vector<1x4xf32> to vector<1x1x4xf32>
    tpu.vector_store %arg2[%c0_1, %c0_2, %c0_3], %5 {strides = array<i32>} : memref<1x1x4xf32, #tpu.memory_space<vmem>>, vector<1x1x4xf32>,
    %6 = arith.mulf %0, %0 : vector<512x4xf32>
    %cst_4 = arith.constant dense<0.000000e+00> : vector<4xf32>
    %7 = vector.multi_reduction <add>, %6, %cst_4 [0] : vector<512x4xf32> to vector<4xf32>
    %8 = vector.shape_cast %7 : vector<4xf32> to vector<1x4xf32>
    %c0_5 = arith.constant 0 : index
    %c0_6 = arith.constant 0 : index
    %c0_7 = arith.constant 0 : index
    %9 = vector.load %arg3[%c0_5, %c0_6, %c0_7] : memref<1x1x4xf32, #tpu.memory_space<vmem>>, vector<1x1x4xf32>
    %10 = vector.shape_cast %9 : vector<1x1x4xf32> to vector<1x4xf32>
    %11 = vector.shape_cast %8 : vector<1x4xf32> to vector<1x1x4xf32>
    tpu.vector_store %arg3[%c0_5, %c0_6, %c0_7], %11 {strides = array<i32>} : memref<1x1x4xf32, #tpu.memory_space<vmem>>, vector<1x1x4xf32>,
    return
  }
  func.func @transform_0(%arg0: i32) -> (i32, i32) {
    %c0_i32 = arith.constant 0 : i32
    %c0_i32_0 = arith.constant 0 : i32
    return %arg0, %c0_i32 : i32, i32
  }
  func.func @transform_1(%arg0: i32) -> (i32, i32, i32) {
    %c0_i32 = arith.constant 0 : i32
    %c0_i32_0 = arith.constant 0 : i32
    %c0_i32_1 = arith.constant 0 : i32
    return %arg0, %c0_i32, %c0_i32_0 : i32, i32, i32
  }
  func.func @transform_2(%arg0: i32) -> (i32, i32, i32) {
    %c0_i32 = arith.constant 0 : i32
    %c0_i32_0 = arith.constant 0 : i32
    %c0_i32_1 = arith.constant 0 : i32
    return %arg0, %c0_i32, %c0_i32_0 : i32, i32, i32
  }
}

</mosaic_0001>

<llo_original>
// kernel: tpu_custom_call.1
$region0: #{tpu_custom_call.1}
  #allocation0 [shape = 'u32[]', space=smem, size = 0x4, offset = 0x4, fixed_abs, tag = 'smem constant byte address 0x4 - core index']
  #allocation1 [shape = 'u32[144,128]{1,0:T(1,128)}', space=vmem, size = 0x12000, scoped, tag = 'internal scratch']
  %s0 = inlined_call_operand.vmem [shape: f32[512,4], index: 0, kind: input, shape index: {}]
  %s1 = inlined_call_operand.hbm [shape: f32[1,1,4], index: 1, kind: output, shape index: {0}]
  %s2 = inlined_call_operand.hbm [shape: f32[1,1,4], index: 2, kind: output, shape index: {1}]
  %3 = xla_tuple %s1, %s2
  %s4 = sld [smem:[#allocation0]]
  $region22: #{tpu_custom_call.1} parent=0
    _
  %s6 = ssub.s32 1, %s4
  %s7 = scalar_select 0, %s6, %s4
  $region1: #{tpu_custom_call.1} parent=0
    #allocation2 [shape = 'u8[512]{0}', space=vmem, size = 0x400, scoped, tag = 'output window, operand 0, single buffered']
    #allocation3 [shape = 's32[1]{0}', space=sflag, size = 0x4, scoped, tag = 'scoped memory for tpu_custom_call.1']
    #allocation4 [shape = 'u8[512]{0}', space=vmem, size = 0x400, scoped, tag = 'output window, operand 1, single buffered']
    #allocation5 [shape = 's32[1]{0}', space=sflag, size = 0x4, scoped, tag = 'scoped memory for tpu_custom_call.1']
    %8 = vsyncpa [#allocation3], 0
    %9 = vsyncpa [#allocation5], 0
    // Predicated region
    $region2: #{tpu_custom_call.1} parent=1 // pred_check
      _
    $region3: #{tpu_custom_call.1} parent=1 // pred_check_branch
      %11 = sbr.rel (0) target = $region5
    $region4: #{tpu_custom_call.1} parent=1 // pred_region
      _
    $region5: #{tpu_custom_call.1} parent=1 // pred_fallthru
      _
    %v12 = vld [vmem:[%s0] sm:$0xff]
    %v13 = vld [vmem:[%s0 + $0x8] sm:$0xff]
    %v14 = vld [vmem:[%s0 + $0x10] sm:$0xff]
    %v15 = vld [vmem:[%s0 + $0x18] sm:$0xff]
    %v16 = vld [vmem:[%s0 + $0x20] sm:$0xff]
    %v17 = vld [vmem:[%s0 + $0x28] sm:$0xff]
    %v18 = vld [vmem:[%s0 + $0x30] sm:$0xff]
    %v19 = vld [vmem:[%s0 + $0x38] sm:$0xff]
    %v20 = vld [vmem:[%s0 + $0x40] sm:$0xff]
    %v21 = vld [vmem:[%s0 + $0x48] sm:$0xff]
    %v22 = vld [vmem:[%s0 + $0x50] sm:$0xff]
    %v23 = vld [vmem:[%s0 + $0x58] sm:$0xff]
    %v24 = vld [vmem:[%s0 + $0x60] sm:$0xff]
    %v25 = vld [vmem:[%s0 + $0x68] sm:$0xff]
    %v26 = vld [vmem:[%s0 + $0x70] sm:$0xff]
    %v27 = vld [vmem:[%s0 + $0x78] sm:$0xff]
    %v28 = vld [vmem:[%s0 + $0x80] sm:$0xff]
    %v29 = vld [vmem:[%s0 + $0x88] sm:$0xff]
    %v30 = vld [vmem:[%s0 + $0x90] sm:$0xff]
    %v31 = vld [vmem:[%s0 + $0x98] sm:$0xff]
    %v32 = vld [vmem:[%s0 + $0xa0] sm:$0xff]
    %v33 = vld [vmem:[%s0 + $0xa8] sm:$0xff]
    %v34 = vld [vmem:[%s0 + $0xb0] sm:$0xff]
    %v35 = vld [vmem:[%s0 + $0xb8] sm:$0xff]
    %v36 = vld [vmem:[%s0 + $0xc0] sm:$0xff]
    %v37 = vld [vmem:[%s0 + $0xc8] sm:$0xff]
    %v38 = vld [vmem:[%s0 + $0xd0] sm:$0xff]
    %v39 = vld [vmem:[%s0 + $0xd8] sm:$0xff]
    %v40 = vld [vmem:[%s0 + $0xe0] sm:$0xff]
    %v41 = vld [vmem:[%s0 + $0xe8] sm:$0xff]
    %v42 = vld [vmem:[%s0 + $0xf0] sm:$0xff]
    %v43 = vld [vmem:[%s0 + $0xf8] sm:$0xff]
    %v44 = vld [vmem:[%s0 + $0x100] sm:$0xff]
    %v45 = vld [vmem:[%s0 + $0x108] sm:$0xff]
    %v46 = vld [vmem:[%s0 + $0x110] sm:$0xff]
    %v47 = vld [vmem:[%s0 + $0x118] sm:$0xff]
    %v48 = vld [vmem:[%s0 + $0x120] sm:$0xff]
    %v49 = vld [vmem:[%s0 + $0x128] sm:$0xff]
    %v50 = vld [vmem:[%s0 + $0x130] sm:$0xff]
    %v51 = vld [vmem:[%s0 + $0x138] sm:$0xff]
    %v52 = vld [vmem:[%s0 + $0x140] sm:$0xff]
    %v53 = vld [vmem:[%s0 + $0x148] sm:$0xff]
    %v54 = vld [vmem:[%s0 + $0x150] sm:$0xff]
    %v55 = vld [vmem:[%s0 + $0x158] sm:$0xff]
    %v56 = vld [vmem:[%s0 + $0x160] sm:$0xff]
    %v57 = vld [vmem:[%s0 + $0x168] sm:$0xff]
    %v58 = vld [vmem:[%s0 + $0x170] sm:$0xff]
    %v59 = vld [vmem:[%s0 + $0x178] sm:$0xff]
    %v60 = vld [vmem:[%s0 + $0x180] sm:$0xff]
    %v61 = vld [vmem:[%s0 + $0x188] sm:$0xff]
    %v62 = vld [vmem:[%s0 + $0x190] sm:$0xff]
    %v63 = vld [vmem:[%s0 + $0x198] sm:$0xff]
    %v64 = vld [vmem:[%s0 + $0x1a0] sm:$0xff]
    %v65 = vld [vmem:[%s0 + $0x1a8] sm:$0xff]
    %v66 = vld [vmem:[%s0 + $0x1b0] sm:$0xff]
    %v67 = vld [vmem:[%s0 + $0x1b8] sm:$0xff]
    %v68 = vld [vmem:[%s0 + $0x1c0] sm:$0xff]
    %v69 = vld [vmem:[%s0 + $0x1c8] sm:$0xff]
    %v70 = vld [vmem:[%s0 + $0x1d0] sm:$0xff]
    %v71 = vld [vmem:[%s0 + $0x1d8] sm:$0xff]
    %v72 = vld [vmem:[%s0 + $0x1e0] sm:$0xff]
    %v73 = vld [vmem:[%s0 + $0x1e8] sm:$0xff]
    %v74 = vld [vmem:[%s0 + $0x1f0] sm:$0xff]
    %v75 = vld [vmem:[%s0 + $0x1f8] sm:$0xff]
    %vm76 = vcmask 31744
    %v77 = vsel %vm76, %v12, 0.0
    %v78 = vsel %vm76, %v13, 0.0
    %v79 = vadd.f32 %v77, %v78
    %v80 = vsel %vm76, %v14, 0.0
    %v81 = vadd.f32 %v79, %v80
    %v82 = vsel %vm76, %v15, 0.0
    %v83 = vadd.f32 %v81, %v82
    %v84 = vsel %vm76, %v16, 0.0
    %v85 = vadd.f32 %v83, %v84
    %v86 = vsel %vm76, %v17, 0.0
    %v87 = vadd.f32 %v85, %v86
    %v88 = vsel %vm76, %v18, 0.0
    %v89 = vadd.f32 %v87, %v88
    %v90 = vsel %vm76, %v19, 0.0
    %v91 = vadd.f32 %v89, %v90
    %v92 = vsel %vm76, %v20, 0.0
    %v93 = vadd.f32 %v91, %v92
    %v94 = vsel %vm76, %v21, 0.0
    %v95 = vadd.f32 %v93, %v94
    %v96 = vsel %vm76, %v22, 0.0
    %v97 = vadd.f32 %v95, %v96
    %v98 = vsel %vm76, %v23, 0.0
    %v99 = vadd.f32 %v97, %v98
    %v100 = vsel %vm76, %v24, 0.0
    %v101 = vadd.f32 %v99, %v100
    %v102 = vsel %vm76, %v25, 0.0
    %v103 = vadd.f32 %v101, %v102
    %v104 = vsel %vm76, %v26, 0.0
    %v105 = vadd.f32 %v103, %v104
    %v106 = vsel %vm76, %v27, 0.0
    %v107 = vadd.f32 %v105, %v106
    %v108 = vsel %vm76, %v28, 0.0
    %v109 = vadd.f32 %v107, %v108
    %v110 = vsel %vm76, %v29, 0.0
    %v111 = vadd.f32 %v109, %v110
    %v112 = vsel %vm76, %v30, 0.0
    %v113 = vadd.f32 %v111, %v112
    %v114 = vsel %vm76, %v31, 0.0
    %v115 = vadd.f32 %v113, %v114
    %v116 = vsel %vm76, %v32, 0.0
    %v117 = vadd.f32 %v115, %v116
    %v118 = vsel %vm76, %v33, 0.0
    %v119 = vadd.f32 %v117, %v118
    %v120 = vsel %vm76, %v34, 0.0
    %v121 = vadd.f32 %v119, %v120
    %v122 = vsel %vm76, %v35, 0.0
    %v123 = vadd.f32 %v121, %v122
    %v124 = vsel %vm76, %v36, 0.0
    %v125 = vadd.f32 %v123, %v124
    %v126 = vsel %vm76, %v37, 0.0
    %v127 = vadd.f32 %v125, %v126
    %v128 = vsel %vm76, %v38, 0.0
    %v129 = vadd.f32 %v127, %v128
    %v130 = vsel %vm76, %v39, 0.0
    %v131 = vadd.f32 %v129, %v130
    %v132 = vsel %vm76, %v40, 0.0
    %v133 = vadd.f32 %v131, %v132
    %v134 = vsel %vm76, %v41, 0.0
    %v135 = vadd.f32 %v133, %v134
    %v136 = vsel %vm76, %v42, 0.0
    %v137 = vadd.f32 %v135, %v136
    %v138 = vsel %vm76, %v43, 0.0
    %v139 = vadd.f32 %v137, %v138
    %v140 = vsel %vm76, %v44, 0.0
    %v141 = vadd.f32 %v139, %v140
    %v142 = vsel %vm76, %v45, 0.0
    %v143 = vadd.f32 %v141, %v142
    %v144 = vsel %vm76, %v46, 0.0
    %v145 = vadd.f32 %v143, %v144
    %v146 = vsel %vm76, %v47, 0.0
    %v147 = vadd.f32 %v145, %v146
    %v148 = vsel %vm76, %v48, 0.0
    %v149 = vadd.f32 %v147, %v148
    %v150 = vsel %vm76, %v49, 0.0
    %v151 = vadd.f32 %v149, %v150
    %v152 = vsel %vm76, %v50, 0.0
    %v153 = vadd.f32 %v151, %v152
    %v154 = vsel %vm76, %v51, 0.0
    %v155 = vadd.f32 %v153, %v154
    %v156 = vsel %vm76, %v52, 0.0
    %v157 = vadd.f32 %v155, %v156
    %v158 = vsel %vm76, %v53, 0.0
    %v159 = vadd.f32 %v157, %v158
    %v160 = vsel %vm76, %v54, 0.0
    %v161 = vadd.f32 %v159, %v160
    %v162 = vsel %vm76, %v55, 0.0
    %v163 = vadd.f32 %v161, %v162
    %v164 = vsel %vm76, %v56, 0.0
    %v165 = vadd.f32 %v163, %v164
    %v166 = vsel %vm76, %v57, 0.0
    %v167 = vadd.f32 %v165, %v166
    %v168 = vsel %vm76, %v58, 0.0
    %v169 = vadd.f32 %v167, %v168
    %v170 = vsel %vm76, %v59, 0.0
    %v171 = vadd.f32 %v169, %v170
    %v172 = vsel %vm76, %v60, 0.0
    %v173 = vadd.f32 %v171, %v172
    %v174 = vsel %vm76, %v61, 0.0
    %v175 = vadd.f32 %v173, %v174
    %v176 = vsel %vm76, %v62, 0.0
    %v177 = vadd.f32 %v175, %v176
    %v178 = vsel %vm76, %v63, 0.0
    %v179 = vadd.f32 %v177, %v178
    %v180 = vsel %vm76, %v64, 0.0
    %v181 = vadd.f32 %v179, %v180
    %v182 = vsel %vm76, %v65, 0.0
    %v183 = vadd.f32 %v181, %v182
    %v184 = vsel %vm76, %v66, 0.0
    %v185 = vadd.f32 %v183, %v184
    %v186 = vsel %vm76, %v67, 0.0
    %v187 = vadd.f32 %v185, %v186
    %v188 = vsel %vm76, %v68, 0.0
    %v189 = vadd.f32 %v187, %v188
    %v190 = vsel %vm76, %v69, 0.0
    %v191 = vadd.f32 %v189, %v190
    %v192 = vsel %vm76, %v70, 0.0
    %v193 = vadd.f32 %v191, %v192
    %v194 = vsel %vm76, %v71, 0.0
    %v195 = vadd.f32 %v193, %v194
    %v196 = vsel %vm76, %v72, 0.0
    %v197 = vadd.f32 %v195, %v196
    %v198 = vsel %vm76, %v73, 0.0
    %v199 = vadd.f32 %v197, %v198
    %v200 = vsel %vm76, %v74, 0.0
    %v201 = vadd.f32 %v199, %v200
    %v202 = vsel %vm76, %v75, 0.0
    %v203 = vadd.f32 %v201, %v202
    %v204 = vrot.slane %v203, 4
    %v205 = vadd.f32 %v203, %v204
    %v206 = vrot.slane %v205, 2
    %v207 = vadd.f32 %v205, %v206
    %v208 = vrot.slane %v207, 1
    %v209 = vadd.f32 %v207, %v208
    %vm210 = vcmask 24576
    %211 = vst.msk [vmem:[#allocation2] sm:$0x1] %vm210, %v209
    %v212 = vmul.f32 %v12, %v12
    %v213 = vmul.f32 %v13, %v13
    %v214 = vmul.f32 %v14, %v14
    %v215 = vmul.f32 %v15, %v15
    %v216 = vmul.f32 %v16, %v16
    %v217 = vmul.f32 %v17, %v17
    %v218 = vmul.f32 %v18, %v18
    %v219 = vmul.f32 %v19, %v19
    %v220 = vmul.f32 %v20, %v20
    %v221 = vmul.f32 %v21, %v21
    %v222 = vmul.f32 %v22, %v22
    %v223 = vmul.f32 %v23, %v23
    %v224 = vmul.f32 %v24, %v24
    %v225 = vmul.f32 %v25, %v25
    %v226 = vmul.f32 %v26, %v26
    %v227 = vmul.f32 %v27, %v27
    %v228 = vmul.f32 %v28, %v28
    %v229 = vmul.f32 %v29, %v29
    %v230 = vmul.f32 %v30, %v30
    %v231 = vmul.f32 %v31, %v31
    %v232 = vmul.f32 %v32, %v32
    %v233 = vmul.f32 %v33, %v33
    %v234 = vmul.f32 %v34, %v34
    %v235 = vmul.f32 %v35, %v35
    %v236 = vmul.f32 %v36, %v36
    %v237 = vmul.f32 %v37, %v37
    %v238 = vmul.f32 %v38, %v38
    %v239 = vmul.f32 %v39, %v39
    %v240 = vmul.f32 %v40, %v40
    %v241 = vmul.f32 %v41, %v41
    %v242 = vmul.f32 %v42, %v42
    %v243 = vmul.f32 %v43, %v43
    %v244 = vmul.f32 %v44, %v44
    %v245 = vmul.f32 %v45, %v45
    %v246 = vmul.f32 %v46, %v46
    %v247 = vmul.f32 %v47, %v47
    %v248 = vmul.f32 %v48, %v48
    %v249 = vmul.f32 %v49, %v49
    %v250 = vmul.f32 %v50, %v50
    %v251 = vmul.f32 %v51, %v51
    %v252 = vmul.f32 %v52, %v52
    %v253 = vmul.f32 %v53, %v53
    %v254 = vmul.f32 %v54, %v54
    %v255 = vmul.f32 %v55, %v55
    %v256 = vmul.f32 %v56, %v56
    %v257 = vmul.f32 %v57, %v57
    %v258 = vmul.f32 %v58, %v58
    %v259 = vmul.f32 %v59, %v59
    %v260 = vmul.f32 %v60, %v60
    %v261 = vmul.f32 %v61, %v61
    %v262 = vmul.f32 %v62, %v62
    %v263 = vmul.f32 %v63, %v63
    %v264 = vmul.f32 %v64, %v64
    %v265 = vmul.f32 %v65, %v65
    %v266 = vmul.f32 %v66, %v66
    %v267 = vmul.f32 %v67, %v67
    %v268 = vmul.f32 %v68, %v68
    %v269 = vmul.f32 %v69, %v69
    %v270 = vmul.f32 %v70, %v70
    %v271 = vmul.f32 %v71, %v71
    %v272 = vmul.f32 %v72, %v72
    %v273 = vmul.f32 %v73, %v73
    %v274 = vmul.f32 %v74, %v74
    %v275 = vmul.f32 %v75, %v75
    %v276 = vsel %vm76, %v212, 0.0
    %v277 = vsel %vm76, %v213, 0.0
    %v278 = vadd.f32 %v276, %v277
    %v279 = vsel %vm76, %v214, 0.0
    %v280 = vadd.f32 %v278, %v279
    %v281 = vsel %vm76, %v215, 0.0
    %v282 = vadd.f32 %v280, %v281
    %v283 = vsel %vm76, %v216, 0.0
    %v284 = vadd.f32 %v282, %v283
    %v285 = vsel %vm76, %v217, 0.0
    %v286 = vadd.f32 %v284, %v285
    %v287 = vsel %vm76, %v218, 0.0
    %v288 = vadd.f32 %v286, %v287
    %v289 = vsel %vm76, %v219, 0.0
    %v290 = vadd.f32 %v288, %v289
    %v291 = vsel %vm76, %v220, 0.0
    %v292 = vadd.f32 %v290, %v291
    %v293 = vsel %vm76, %v221, 0.0
    %v294 = vadd.f32 %v292, %v293
    %v295 = vsel %vm76, %v222, 0.0
    %v296 = vadd.f32 %v294, %v295
    %v297 = vsel %vm76, %v223, 0.0
    %v298 = vadd.f32 %v296, %v297
    %v299 = vsel %vm76, %v224, 0.0
    %v300 = vadd.f32 %v298, %v299
    %v301 = vsel %vm76, %v225, 0.0
    %v302 = vadd.f32 %v300, %v301
    %v303 = vsel %vm76, %v226, 0.0
    %v304 = vadd.f32 %v302, %v303
    %v305 = vsel %vm76, %v227, 0.0
    %v306 = vadd.f32 %v304, %v305
    %v307 = vsel %vm76, %v228, 0.0
    %v308 = vadd.f32 %v306, %v307
    %v309 = vsel %vm76, %v229, 0.0
    %v310 = vadd.f32 %v308, %v309
    %v311 = vsel %vm76, %v230, 0.0
    %v312 = vadd.f32 %v310, %v311
    %v313 = vsel %vm76, %v231, 0.0
    %v314 = vadd.f32 %v312, %v313
    %v315 = vsel %vm76, %v232, 0.0
    %v316 = vadd.f32 %v314, %v315
    %v317 = vsel %vm76, %v233, 0.0
    %v318 = vadd.f32 %v316, %v317
    %v319 = vsel %vm76, %v234, 0.0
    %v320 = vadd.f32 %v318, %v319
    %v321 = vsel %vm76, %v235, 0.0
    %v322 = vadd.f32 %v320, %v321
    %v323 = vsel %vm76, %v236, 0.0
    %v324 = vadd.f32 %v322, %v323
    %v325 = vsel %vm76, %v237, 0.0
    %v326 = vadd.f32 %v324, %v325
    %v327 = vsel %vm76, %v238, 0.0
    %v328 = vadd.f32 %v326, %v327
    %v329 = vsel %vm76, %v239, 0.0
    %v330 = vadd.f32 %v328, %v329
    %v331 = vsel %vm76, %v240, 0.0
    %v332 = vadd.f32 %v330, %v331
    %v333 = vsel %vm76, %v241, 0.0
    %v334 = vadd.f32 %v332, %v333
    %v335 = vsel %vm76, %v242, 0.0
    %v336 = vadd.f32 %v334, %v335
    %v337 = vsel %vm76, %v243, 0.0
    %v338 = vadd.f32 %v336, %v337
    %v339 = vsel %vm76, %v244, 0.0
    %v340 = vadd.f32 %v338, %v339
    %v341 = vsel %vm76, %v245, 0.0
    %v342 = vadd.f32 %v340, %v341
    %v343 = vsel %vm76, %v246, 0.0
    %v344 = vadd.f32 %v342, %v343
    %v345 = vsel %vm76, %v247, 0.0
    %v346 = vadd.f32 %v344, %v345
    %v347 = vsel %vm76, %v248, 0.0
    %v348 = vadd.f32 %v346, %v347
    %v349 = vsel %vm76, %v249, 0.0
    %v350 = vadd.f32 %v348, %v349
    %v351 = vsel %vm76, %v250, 0.0
    %v352 = vadd.f32 %v350, %v351
    %v353 = vsel %vm76, %v251, 0.0
    %v354 = vadd.f32 %v352, %v353
    %v355 = vsel %vm76, %v252, 0.0
    %v356 = vadd.f32 %v354, %v355
    %v357 = vsel %vm76, %v253, 0.0
    %v358 = vadd.f32 %v356, %v357
    %v359 = vsel %vm76, %v254, 0.0
    %v360 = vadd.f32 %v358, %v359
    %v361 = vsel %vm76, %v255, 0.0
    %v362 = vadd.f32 %v360, %v361
    %v363 = vsel %vm76, %v256, 0.0
    %v364 = vadd.f32 %v362, %v363
    %v365 = vsel %vm76, %v257, 0.0
    %v366 = vadd.f32 %v364, %v365
    %v367 = vsel %vm76, %v258, 0.0
    %v368 = vadd.f32 %v366, %v367
    %v369 = vsel %vm76, %v259, 0.0
    %v370 = vadd.f32 %v368, %v369
    %v371 = vsel %vm76, %v260, 0.0
    %v372 = vadd.f32 %v370, %v371
    %v373 = vsel %vm76, %v261, 0.0
    %v374 = vadd.f32 %v372, %v373
    %v375 = vsel %vm76, %v262, 0.0
    %v376 = vadd.f32 %v374, %v375
    %v377 = vsel %vm76, %v263, 0.0
    %v378 = vadd.f32 %v376, %v377
    %v379 = vsel %vm76, %v264, 0.0
    %v380 = vadd.f32 %v378, %v379
    %v381 = vsel %vm76, %v265, 0.0
    %v382 = vadd.f32 %v380, %v381
    %v383 = vsel %vm76, %v266, 0.0
    %v384 = vadd.f32 %v382, %v383
    %v385 = vsel %vm76, %v267, 0.0
    %v386 = vadd.f32 %v384, %v385
    %v387 = vsel %vm76, %v268, 0.0
    %v388 = vadd.f32 %v386, %v387
    %v389 = vsel %vm76, %v269, 0.0
    %v390 = vadd.f32 %v388, %v389
    %v391 = vsel %vm76, %v270, 0.0
    %v392 = vadd.f32 %v390, %v391
    %v393 = vsel %vm76, %v271, 0.0
    %v394 = vadd.f32 %v392, %v393
    %v395 = vsel %vm76, %v272, 0.0
    %v396 = vadd.f32 %v394, %v395
    %v397 = vsel %vm76, %v273, 0.0
    %v398 = vadd.f32 %v396, %v397
    %v399 = vsel %vm76, %v274, 0.0
    %v400 = vadd.f32 %v398, %v399
    %v401 = vsel %vm76, %v275, 0.0
    %v402 = vadd.f32 %v400, %v401
    %v403 = vrot.slane %v402, 4
    %v404 = vadd.f32 %v402, %v403
    %v405 = vrot.slane %v404, 2
    %v406 = vadd.f32 %v404, %v405
    %v407 = vrot.slane %v406, 1
    %v408 = vadd.f32 %v406, %v407
    %409 = vst.msk [vmem:[#allocation4] sm:$0x1] %vm210, %v408
    // Predicated region
    $region6: #{tpu_custom_call.1} parent=1 // pred_check
      _
    $region7: #{tpu_custom_call.1} parent=1 // pred_check_branch
      %411 = sbr.rel (0) target = $region9
    $region8: #{tpu_custom_call.1} parent=1 // pred_region
      %s413 = ssub.s32 16, 16
      %414 = vsyncadd [#allocation3], %s413
      %s416 = sshll.u32 [#allocation2], 4
      %s417 = int_to_ptr.vmem [resolvable:$true] %s416
      %419 = dma.vmem_to_hbm [thread:$0]  %s417, 16, %s1, [#allocation3]
    $region9: #{tpu_custom_call.1} parent=1 // pred_fallthru
      _
    // Predicated region
    $region10: #{tpu_custom_call.1} parent=1 // pred_check
      _
    $region11: #{tpu_custom_call.1} parent=1 // pred_check_branch
      %421 = sbr.rel (0) target = $region13
    $region12: #{tpu_custom_call.1} parent=1 // pred_region
      %s423 = ssub.s32 16, 16
      %424 = vsyncadd [#allocation5], %s423
      %s426 = sshll.u32 [#allocation4], 4
      %s427 = int_to_ptr.vmem [resolvable:$true] %s426
      %429 = dma.vmem_to_hbm [thread:$0]  %s427, 16, %s2, [#allocation5]
    $region13: #{tpu_custom_call.1} parent=1 // pred_fallthru
      _
    // Predicated region
    $region14: #{tpu_custom_call.1} parent=1 // pred_check
      _
    $region15: #{tpu_custom_call.1} parent=1 // pred_check_branch
      %431 = sbr.rel (0) target = $region17
    $region16: #{tpu_custom_call.1} parent=1 // pred_region
      %432 = dma.done [#allocation3], 16
    $region17: #{tpu_custom_call.1} parent=1 // pred_fallthru
      _
    // Predicated region
    $region18: #{tpu_custom_call.1} parent=1 // pred_check
      _
    $region19: #{tpu_custom_call.1} parent=1 // pred_check_branch
      %434 = sbr.rel (0) target = $region21
    $region20: #{tpu_custom_call.1} parent=1 // pred_region
      %435 = dma.done [#allocation5], 16
    $region21: #{tpu_custom_call.1} parent=1 // pred_fallthru
      _
    %436 = vsyncpa [#allocation3], 1
    %437 = vsyncpa [#allocation5], 1

</llo_original>
